<compile_context>
chip_gen: v5e
topology: v5e:2x2
jax: 0.10.0
libtpu: 0.0.40
codegen_flags: <defaults>
</compile_context>

<pallas_src>
import functools

import jax
import jax.numpy as jnp
from jax.experimental import pallas as pl
from jax.experimental.pallas import tpu as pltpu

DROPOUT_P = 0.1
# drop iff bits < round(p * 2**32)  =>  keep prob = 1 - p (exact integer test)
DROP_THRESHOLD = int(round(DROPOUT_P * (1 << 32)))  # 429496730
KEEP_SCALE = 1.0 / (1.0 - DROPOUT_P)


def _nnblock_kernel(x_ref, w_ref, b_ref, *rest, training):
    if training:
        bits_ref, o_ref, acc_ref = rest
    else:
        o_ref, acc_ref = rest

    k = pl.program_id(2)

    @pl.when(k == 0)
    def _init():
        acc_ref[...] = jnp.zeros_like(acc_ref)

    # MXU matmul on bf16 tiles with f32 accumulation.
    acc_ref[...] += jnp.dot(
        x_ref[...], w_ref[...], preferred_element_type=jnp.float32
    )

    @pl.when(k == pl.num_programs(2) - 1)
    def _finalize():
        y = acc_ref[...] + b_ref[...].astype(jnp.float32)
        if training:
            # Inverted dropout via integer compare on raw bits, fused with ReLU
            # into a single select: ReLU(dropout(y)) == where(keep & y>0, y/s, 0)
            keep = bits_ref[...] >= jnp.uint32(DROP_THRESHOLD)
            out = jnp.where(keep & (y > 0.0), y * KEEP_SCALE, 0.0)
        else:
            out = jnp.maximum(y, 0.0)
        o_ref[...] = out.astype(o_ref.dtype)


def nnblocks_forward(
    x,
    w_t,
    b,
    *,
    dropout_key=None,
    training=True,
    tm=128,
    tn=256,
    tk=256,
    compute_dtype=jnp.bfloat16,
):
    """Forward pass of NNBlocks.

    x   : [B, D_in]  float32
    w_t : [D_in, D_out] (nn.Linear weight, pre-transposed)
    b   : [1, D_out] or [D_out]
    dropout_key : jax PRNG key (required when training=True)
    """
    B, D_in = x.shape
    D_out = w_t.shape[1]

    # Clamp tiles to the problem size (small demo shapes use full-extent blocks).
    tm = min(tm, B)
    tn = min(tn, D_out)
    tk = min(tk, D_in)
    assert B % tm == 0 and D_out % tn == 0 and D_in % tk == 0, (
        "dims must be divisible by the (clamped) tile sizes"
    )

    x_c = x.astype(compute_dtype)
    w_c = w_t.astype(compute_dtype)
    b2 = jnp.asarray(b, jnp.float32).reshape(1, D_out)

    inputs = [x_c, w_c, b2]
    in_specs = [
        pl.BlockSpec((tm, tk), lambda i, j, k: (i, k)),
        pl.BlockSpec((tk, tn), lambda i, j, k: (k, j)),
        # bias: indexed only by the D_out axis, re-used across the K loop
        pl.BlockSpec((1, tn), lambda i, j, k: (0, j)),
    ]

    if training:
        if dropout_key is None:
            raise ValueError("training=True requires dropout_key")
        bits = jax.random.bits(dropout_key, (B, D_out), dtype=jnp.uint32)
        inputs.append(bits)
        # indexed only by (M, N): constant across K, so fetched once per tile
        in_specs.append(pl.BlockSpec((tm, tn), lambda i, j, k: (i, j)))

    kernel = functools.partial(_nnblock_kernel, training=training)
    grid = (B // tm, D_out // tn, D_in // tk)

    return pl.pallas_call(
        kernel,
        out_shape=jax.ShapeDtypeStruct((B, D_out), jnp.float32),
        grid_spec=pltpu.PrefetchScalarGridSpec(
            num_scalar_prefetch=0,
            grid=grid,
            in_specs=in_specs,
            out_specs=pl.BlockSpec((tm, tn), lambda i, j, k: (i, j)),
            scratch_shapes=[pltpu.VMEM((tm, tn), jnp.float32)],
        ),
        compiler_params=pltpu.CompilerParams(
            dimension_semantics=("parallel", "parallel", "arbitrary"),
            vmem_limit_bytes=64 * 1024 * 1024,
        ),
    )(*inputs)


def init_params(key, input_dims, output_dims):
    """nn.Linear default init: U(-1/sqrt(fan_in), 1/sqrt(fan_in))."""
    kw, kb = jax.random.split(key)
    bound = 1.0 / (input_dims ** 0.5)
    # PyTorch stores weight as [out, in]; we keep the transposed [in, out] layout.
    w_t = jax.random.uniform(
        kw, (input_dims, output_dims), jnp.float32, minval=-bound, maxval=bound
    )
    b = jax.random.uniform(
        kb, (1, output_dims), jnp.float32, minval=-bound, maxval=bound
    )
    return w_t, b


if __name__ == "__main__":
    key = jax.random.PRNGKey(0)
    k_x, k_p, k_drop = jax.random.split(key, 3)

    batch = 16
    input_dims = 256
    output_dims = 256

    x = jax.random.normal(k_x, (batch, input_dims), jnp.float32)
    w_t, b = init_params(k_p, input_dims, output_dims)

    # Training-mode forward (PyTorch modules default to train(), so dropout is
    # active).  tm clamps to the batch; tn/tk = 128 give a (1, 2, 2) grid that
    # exercises the K-reduction accumulator and the lane-dense output tiles.
    out = nnblocks_forward(
        x, w_t, b, dropout_key=k_drop, training=True, tm=128, tn=128, tk=128
    )
    jax.block_until_ready(out)
    assert out.shape == (batch, output_dims)
    assert bool(jnp.all(out >= 0.0))  # ReLU output is non-negative

    # Eval-mode sanity check against a plain-JAX reference (same bf16 compute).
    out_eval = nnblocks_forward(x, w_t, b, training=False, tm=128, tn=128, tk=128)
    jax.block_until_ready(out_eval)
    ref = jnp.maximum(
        jnp.dot(
            x.astype(jnp.bfloat16),
            w_t.astype(jnp.bfloat16),
            preferred_element_type=jnp.float32,
        )
        + b,
        0.0,
    )
    assert bool(jnp.allclose(out_eval, ref, atol=1e-2, rtol=1e-2))

    print("KERNEL_OK")
</pallas_src>

<mosaic_0001>
module attributes {stable_mosaic.version = 11 : i64} {
  func.func @_nnblock_kernel(%arg0: i32, %arg1: i32, %arg2: i32, %arg3: memref<16x128xbf16, #tpu.memory_space<vmem>>, %arg4: memref<128x128xbf16, #tpu.memory_space<vmem>>, %arg5: memref<1x128xf32, #tpu.memory_space<vmem>>, %arg6: memref<16x128xi32, #tpu.memory_space<vmem>>, %arg7: memref<16x128xf32, #tpu.memory_space<vmem>>, %arg8: memref<16x128xf32, #tpu.memory_space<vmem>>) attributes {dimension_semantics = [#tpu.dimension_semantics<parallel>, #tpu.dimension_semantics<parallel>, #tpu.dimension_semantics<arbitrary>], iteration_bounds = array<i64: 1, 2, 2>, scalar_prefetch = 0 : i64, scratch_operands = 1 : i64, tpu.core_type = #tpu.core_type<tc>, window_params = [{transform_indices = @transform_0, window_bounds = array<i64: 16, 128>}, {transform_indices = @transform_1, window_bounds = array<i64: 128, 128>}, {transform_indices = @transform_2, window_bounds = array<i64: 1, 128>}, {transform_indices = @transform_3, window_bounds = array<i64: 16, 128>}, {transform_indices = @transform_4, window_bounds = array<i64: 16, 128>}]} {
    %c0_i32 = arith.constant 0 : i32
    %0 = arith.cmpi eq, %arg2, %c0_i32 : i32
    %1 = arith.extui %0 : i1 to i32
    %c0_i32_0 = arith.constant 0 : i32
    %2 = arith.cmpi ne, %1, %c0_i32_0 : i32
    scf.if %2 {
      %cst_9 = arith.constant 0.000000e+00 : f32
      %12 = vector.broadcast %cst_9 : f32 to vector<16x128xf32>
      %c0_10 = arith.constant 0 : index
      %c0_11 = arith.constant 0 : index
      %13 = vector.load %arg8[%c0_10, %c0_11] : memref<16x128xf32, #tpu.memory_space<vmem>>, vector<16x128xf32>
      tpu.vector_store %arg8[%c0_10, %c0_11], %12 {strides = array<i32>} : memref<16x128xf32, #tpu.memory_space<vmem>>, vector<16x128xf32>,
    } else {
    }
    %c0 = arith.constant 0 : index
    %c0_1 = arith.constant 0 : index
    %3 = vector.load %arg8[%c0, %c0_1] : memref<16x128xf32, #tpu.memory_space<vmem>>, vector<16x128xf32>
    %c0_2 = arith.constant 0 : index
    %c0_3 = arith.constant 0 : index
    %4 = vector.load %arg3[%c0_2, %c0_3] : memref<16x128xbf16, #tpu.memory_space<vmem>>, vector<16x128xbf16>
    %c0_4 = arith.constant 0 : index
    %c0_5 = arith.constant 0 : index
    %5 = vector.load %arg4[%c0_4, %c0_5] : memref<128x128xbf16, #tpu.memory_space<vmem>>, vector<128x128xbf16>
    %cst = arith.constant dense<0.000000e+00> : vector<16x128xf32>
    %6 = tpu.matmul %4, %5, %cst {dimension_numbers = #tpu.dot_dimension_numbers<[1], [0], [0], [1], [0, 0, 1, 1], [], []>} : vector<16x128xbf16>, vector<128x128xbf16>, vector<16x128xf32> -> vector<16x128xf32>
    %7 = arith.addf %3, %6 : vector<16x128xf32>
    %c0_6 = arith.constant 0 : index
    %c0_7 = arith.constant 0 : index
    %8 = vector.load %arg8[%c0_6, %c0_7] : memref<16x128xf32, #tpu.memory_space<vmem>>, vector<16x128xf32>
    tpu.vector_store %arg8[%c0_6, %c0_7], %7 {strides = array<i32>} : memref<16x128xf32, #tpu.memory_space<vmem>>, vector<16x128xf32>,
    %c1_i32 = arith.constant 1 : i32
    %9 = arith.cmpi eq, %arg2, %c1_i32 : i32
    %10 = arith.extui %9 : i1 to i32
    %c0_i32_8 = arith.constant 0 : i32
    %11 = arith.cmpi ne, %10, %c0_i32_8 : i32
    scf.if %11 {
      %c0_9 = arith.constant 0 : index
      %c0_10 = arith.constant 0 : index
      %12 = vector.load %arg8[%c0_9, %c0_10] : memref<16x128xf32, #tpu.memory_space<vmem>>, vector<16x128xf32>
      %c0_11 = arith.constant 0 : index
      %c0_12 = arith.constant 0 : index
      %13 = vector.load %arg5[%c0_11, %c0_12] : memref<1x128xf32, #tpu.memory_space<vmem>>, vector<1x128xf32>
      %14 = vector.broadcast %13 : vector<1x128xf32> to vector<16x128xf32>
      %15 = arith.addf %12, %14 : vector<16x128xf32>
      %c0_13 = arith.constant 0 : index
      %c0_14 = arith.constant 0 : index
      %16 = vector.load %arg6[%c0_13, %c0_14] : memref<16x128xi32, #tpu.memory_space<vmem>>, vector<16x128xi32>
      %c429496730_i32 = arith.constant 429496730 : i32
      %17 = vector.broadcast %c429496730_i32 : i32 to vector<16x128xi32>
      %18 = arith.cmpi uge, %16, %17 : vector<16x128xi32>
      %cst_15 = arith.constant 0.000000e+00 : f32
      %19 = vector.broadcast %cst_15 : f32 to vector<16x128xf32>
      %20 = arith.cmpf ogt, %15, %19 : vector<16x128xf32>
      %21 = arith.andi %18, %20 : vector<16x128xi1>
      %cst_16 = arith.constant 1.11111116 : f32
      %22 = vector.broadcast %cst_16 : f32 to vector<16x128xf32>
      %23 = arith.mulf %15, %22 : vector<16x128xf32>
      %cst_17 = arith.constant 0.000000e+00 : f32
      %24 = vector.broadcast %cst_17 : f32 to vector<16x128xf32>
      %25 = arith.select %21, %23, %24 : vector<16x128xi1>, vector<16x128xf32>
      %c0_18 = arith.constant 0 : index
      %c0_19 = arith.constant 0 : index
      %26 = vector.load %arg7[%c0_18, %c0_19] : memref<16x128xf32, #tpu.memory_space<vmem>>, vector<16x128xf32>
      tpu.vector_store %arg7[%c0_18, %c0_19], %25 {strides = array<i32>} : memref<16x128xf32, #tpu.memory_space<vmem>>, vector<16x128xf32>,
    } else {
    }
    return
  }
  func.func @transform_0(%arg0: i32, %arg1: i32, %arg2: i32) -> (i32, i32) {
    %c0_i32 = arith.constant 0 : i32
    return %arg0, %arg2 : i32, i32
  }
  func.func @transform_1(%arg0: i32, %arg1: i32, %arg2: i32) -> (i32, i32) {
    %c0_i32 = arith.constant 0 : i32
    return %arg2, %arg1 : i32, i32
  }
  func.func @transform_2(%arg0: i32, %arg1: i32, %arg2: i32) -> (i32, i32) {
    %c0_i32 = arith.constant 0 : i32
    %c0_i32_0 = arith.constant 0 : i32
    return %c0_i32, %arg1 : i32, i32
  }
  func.func @transform_3(%arg0: i32, %arg1: i32, %arg2: i32) -> (i32, i32) {
    %c0_i32 = arith.constant 0 : i32
    return %arg0, %arg1 : i32, i32
  }
  func.func @transform_4(%arg0: i32, %arg1: i32, %arg2: i32) -> (i32, i32) {
    %c0_i32 = arith.constant 0 : i32
    return %arg0, %arg1 : i32, i32
  }
}

</mosaic_0001>

<llo_original>
// kernel: tpu_custom_call.1
$region0: #{tpu_custom_call.1}
  #allocation0 [shape = 'u32[]', space=smem, size = 0x4, offset = 0x4, fixed_abs, tag = 'smem constant byte address 0x4 - core index']
  #allocation1 [shape = 'u32[72,128]{1,0:T(1,128)}', space=vmem, size = 0x9000, scoped, tag = 'internal scratch']
  #allocation2 [shape = 'f32[16,128]{1,0:T(8,128)}', space=vmem, size = 0x2000, scoped, tag = 'scratch operand']
  %s0 = inlined_call_operand.hbm [shape: bf16[16,256], index: 0, kind: input, shape index: {}]
  %s1 = inlined_call_operand.hbm [shape: bf16[256,256], index: 1, kind: input, shape index: {}]
  %s2 = inlined_call_operand.hbm [shape: f32[1,256], index: 2, kind: input, shape index: {}]
  %s3 = inlined_call_operand.hbm [shape: u32[16,256], index: 3, kind: input, shape index: {}]
  %s4 = inlined_call_operand.hbm [shape: f32[16,256], index: 4, kind: output, shape index: {}]
  %s5 = sld [smem:[#allocation0]]
  $region73: #{tpu_custom_call.1} parent=0
    _
  %s7 = ssub.s32 1, %s5
  %s8 = scalar_select 0, %s7, %s5
  $region1: #{tpu_custom_call.1} parent=0
    #allocation3 [shape = 'u8[8192]{0}', space=vmem, size = 0x2000, scoped, tag = 'input window, operand 0']
    #allocation4 [shape = 's32[2]{0}', space=sflag, size = 0x8, scoped, tag = 'scoped memory for tpu_custom_call.1']
    #allocation5 [shape = 's32[2]{0}', space=sflag, size = 0x8, scoped, tag = 'scoped memory for tpu_custom_call.1']
    #allocation6 [shape = 'u8[65536]{0}', space=vmem, size = 0x10000, scoped, tag = 'input window, operand 1']
    #allocation7 [shape = 's32[2]{0}', space=sflag, size = 0x8, scoped, tag = 'scoped memory for tpu_custom_call.1']
    #allocation8 [shape = 'u8[1024]{0}', space=vmem, size = 0x400, scoped, tag = 'input window, operand 2']
    #allocation9 [shape = 'u8[16384]{0}', space=vmem, size = 0x4000, scoped, tag = 'input window, operand 3']
    #allocation10 [shape = 's32[2]{0}', space=sflag, size = 0x8, scoped, tag = 'scoped memory for tpu_custom_call.1']
    #allocation11 [shape = 'u8[16384]{0}', space=vmem, size = 0x4000, scoped, tag = 'output window, operand 0']
    %9 = vsyncpa [#allocation4], 0
    %s10 = scalar_lea.sflag [#allocation4], 1
    %11 = vsyncpa %s10, 0
    %12 = vsyncpa [#allocation7], 0
    %s13 = scalar_lea.sflag [#allocation7], 1
    %14 = vsyncpa %s13, 0
    %15 = vsyncpa [#allocation10], 0
    %s16 = scalar_lea.sflag [#allocation10], 1
    %17 = vsyncpa %s16, 0
    %18 = vsyncpa [#allocation5], 0
    %s19 = scalar_lea.sflag [#allocation5], 1
    %20 = vsyncpa %s19, 0
    loop: start=0, step=1, limit=6
    $region2: #{tpu_custom_call.1} parent=1 // loop_pre_header
      _
    $region3: #{tpu_custom_call.1} parent=1 // loop_header
      %s22 = sphi 0, %s26
      %p23 = scmp.ge.s32.totalorder %s22, 6
      %s29 = sphi 0, %s48
      %s30 = sphi 0, %s44
      %s31 = sphi 0, %s40
      %s32 = sphi 0, %s29
      %s33 = sphi 0, %s30
      %s34 = sphi 0, %s31
      %s35 = sphi 0, %s32
      %s36 = sphi 0, %s33
      %s37 = sphi 0, %s34
      %s53 = sphi 0, %s55
      %s56 = sphi 0, %s53
      %s57 = sphi 0, %s56
      %s73 = sphi 0, %s57
      %s81 = sphi 0, %s83
      %s84 = sphi 0, %s81
      %s85 = sphi 0, %s84
      %s101 = sphi 0, %s85
      %s107 = sphi 0, %s109
      %s110 = sphi 0, %s107
      %s111 = sphi 0, %s110
      %s127 = sphi 0, %s111
      %s135 = sphi 0, %s137
      %s138 = sphi 0, %s135
      %s139 = sphi 0, %s138
      %s155 = sphi 0, %s139
      %s163 = sphi 0, %s165
      %s166 = sphi 0, %s163
      %s167 = sphi 0, %s166
      %s183 = sphi 0, %s167
    $region4: #{tpu_custom_call.1} parent=1 // loop_header_branch
      %25 = sbr.rel (%p23) target = $region8
    $region5: #{tpu_custom_call.1} parent=1 // loop_body
      %s27 = ssub.s32 %s22, 1
      %s28 = ssub.s32 %s22, 2
      %s38 = sadd.s32 1, %s31
      %p39 = scmp.ge.s32.totalorder %s38, 2
      %s40 = scalar_select %p39, 0, %s38
      %s41 = sadd.s32 1, %s30
      %s42 = scalar_select %p39, %s41, %s30
      %p43 = scmp.ge.s32.totalorder %s42, 2
      %s44 = scalar_select %p43, 0, %s42
      %s45 = sadd.s32 1, %s29
      %s46 = scalar_select %p43, %s45, %s29
      %p47 = scmp.ge.s32.totalorder %s46, 1
      %s48 = scalar_select %p47, 0, %s46
      %s49 = ssub.s32 %s29, %s48
      %s50 = ssub.s32 %s31, %s40
      %s51 = sor.u32 %s49, %s50
      %p52 = scmp.eq.s32.totalorder %s51, 0
      %s54 = sadd.s32 %s53, 1
      %s55 = scalar_select %p52, %s53, %s54
      %p58 = pneg %p52
      %p59 = scmp.eq.s32.totalorder %s22, 3
      %p60 = por %p58, %p59
      %p61 = scmp.ne.s32.totalorder %s53, %s56
      %p62 = scmp.eq.s32.totalorder %s22, 0
      %p63 = por %p61, %p62
      %p64 = scmp.ne.s32.totalorder %s53, %s56
      %p65 = scmp.eq.s32.totalorder %s27, 3
      %p66 = por %p64, %p65
      %p67 = scmp.ne.s32.totalorder %s56, %s57
      %p68 = scmp.eq.s32.totalorder %s27, 0
      %p69 = por %p67, %p68
      %p70 = scmp.ne.s32.totalorder %s56, %s57
      %p71 = scmp.eq.s32.totalorder %s28, 3
      %p72 = por %p70, %p71
      %p74 = scmp.ne.s32.totalorder %s57, %s73
      %p75 = scmp.eq.s32.totalorder %s28, 0
      %p76 = por %p74, %p75
      %s77 = ssub.s32 %s31, %s40
      %s78 = ssub.s32 %s30, %s44
      %s79 = sor.u32 %s77, %s78
      %p80 = scmp.eq.s32.totalorder %s79, 0
      %s82 = sadd.s32 %s81, 1
      %s83 = scalar_select %p80, %s81, %s82
      %p86 = pneg %p80
      %p87 = scmp.eq.s32.totalorder %s22, 3
      %p88 = por %p86, %p87
      %p89 = scmp.ne.s32.totalorder %s81, %s84
      %p90 = scmp.eq.s32.totalorder %s22, 0
      %p91 = por %p89, %p90
      %p92 = scmp.ne.s32.totalorder %s81, %s84
      %p93 = scmp.eq.s32.totalorder %s27, 3
      %p94 = por %p92, %p93
      %p95 = scmp.ne.s32.totalorder %s84, %s85
      %p96 = scmp.eq.s32.totalorder %s27, 0
      %p97 = por %p95, %p96
      %p98 = scmp.ne.s32.totalorder %s84, %s85
      %p99 = scmp.eq.s32.totalorder %s28, 3
      %p100 = por %p98, %p99
      %p102 = scmp.ne.s32.totalorder %s85, %s101
      %p103 = scmp.eq.s32.totalorder %s28, 0
      %p104 = por %p102, %p103
      %s105 = ssub.s32 %s30, %s44
      %p106 = scmp.eq.s32.totalorder %s105, 0
      %s108 = sadd.s32 %s107, 1
      %s109 = scalar_select %p106, %s107, %s108
      %p112 = pneg %p106
      %p113 = scmp.eq.s32.totalorder %s22, 3
      %p114 = por %p112, %p113
      %p115 = scmp.ne.s32.totalorder %s107, %s110
      %p116 = scmp.eq.s32.totalorder %s22, 0
      %p117 = por %p115, %p116
      %p118 = scmp.ne.s32.totalorder %s107, %s110
      %p119 = scmp.eq.s32.totalorder %s27, 3
      %p120 = por %p118, %p119
      %p121 = scmp.ne.s32.totalorder %s110, %s111
      %p122 = scmp.eq.s32.totalorder %s27, 0
      %p123 = por %p121, %p122
      %p124 = scmp.ne.s32.totalorder %s110, %s111
      %p125 = scmp.eq.s32.totalorder %s28, 3
      %p126 = por %p124, %p125
      %p128 = scmp.ne.s32.totalorder %s111, %s127
      %p129 = scmp.eq.s32.totalorder %s28, 0
      %p130 = por %p128, %p129
      %s131 = ssub.s32 %s29, %s48
      %s132 = ssub.s32 %s30, %s44
      %s133 = sor.u32 %s131, %s132
      %p134 = scmp.eq.s32.totalorder %s133, 0
      %s136 = sadd.s32 %s135, 1
      %s137 = scalar_select %p134, %s135, %s136
      %p140 = pneg %p134
      %p141 = scmp.eq.s32.totalorder %s22, 3
      %p142 = por %p140, %p141
      %p143 = scmp.ne.s32.totalorder %s135, %s138
      %p144 = scmp.eq.s32.totalorder %s22, 0
      %p145 = por %p143, %p144
      %p146 = scmp.ne.s32.totalorder %s135, %s138
      %p147 = scmp.eq.s32.totalorder %s27, 3
      %p148 = por %p146, %p147
      %p149 = scmp.ne.s32.totalorder %s138, %s139
      %p150 = scmp.eq.s32.totalorder %s27, 0
      %p151 = por %p149, %p150
      %p152 = scmp.ne.s32.totalorder %s138, %s139
      %p153 = scmp.eq.s32.totalorder %s28, 3
      %p154 = por %p152, %p153
      %p156 = scmp.ne.s32.totalorder %s139, %s155
      %p157 = scmp.eq.s32.totalorder %s28, 0
      %p158 = por %p156, %p157
      %s159 = ssub.s32 %s29, %s48
      %s160 = ssub.s32 %s30, %s44
      %s161 = sor.u32 %s159, %s160
      %p162 = scmp.eq.s32.totalorder %s161, 0
      %s164 = sadd.s32 %s163, 1
      %s165 = scalar_select %p162, %s163, %s164
      %p168 = pneg %p162
      %p169 = scmp.eq.s32.totalorder %s22, 3
      %p170 = por %p168, %p169
      %p171 = scmp.ne.s32.totalorder %s163, %s166
      %p172 = scmp.eq.s32.totalorder %s22, 0
      %p173 = por %p171, %p172
      %p174 = scmp.ne.s32.totalorder %s163, %s166
      %p175 = scmp.eq.s32.totalorder %s27, 3
      %p176 = por %p174, %p175
      %p177 = scmp.ne.s32.totalorder %s166, %s167
      %p178 = scmp.eq.s32.totalorder %s27, 0
      %p179 = por %p177, %p178
      %p180 = scmp.ne.s32.totalorder %s166, %s167
      %p181 = scmp.eq.s32.totalorder %s28, 3
      %p182 = por %p180, %p181
      %p184 = scmp.ne.s32.totalorder %s167, %s183
      %p185 = scmp.eq.s32.totalorder %s28, 0
      %p186 = por %p184, %p185
      %p187 = scmp.le.s32.totalorder 1, %s22
      %p188 = scmp.lt.s32.totalorder %s22, 5
      %p189 = pnand %p187, %p188
      %p190 = pneg %p189
      // Predicated region
      $region9: #{tpu_custom_call.1} parent=5 // pred_check
        _
      $region10: #{tpu_custom_call.1} parent=5 // pred_check_branch
        %192 = sbr.rel (%p189) target = $region12
      $region11: #{tpu_custom_call.1} parent=5 // pred_region
        %s193 = ssub.s32 %s22, 1
      $region12: #{tpu_custom_call.1} parent=5 // pred_fallthru
        _
      %p194 = scmp.lt.s32.totalorder %s22, 4
      // Predicated region
      $region13: #{tpu_custom_call.1} parent=5 // pred_check
        %p195 = pneg %p194
      $region14: #{tpu_custom_call.1} parent=5 // pred_check_branch
        %197 = sbr.rel (%p195) target = $region16
      $region15: #{tpu_custom_call.1} parent=5 // pred_region
        // Predicated region
        $region17: #{tpu_custom_call.1} parent=15 // pred_check
          %p198 = pneg %p63
        $region18: #{tpu_custom_call.1} parent=15 // pred_check_branch
          %200 = sbr.rel (%p198) target = $region20
        $region19: #{tpu_custom_call.1} parent=15 // pred_region
          %s201 = sand.u32 %s53, 1
          %s202 = scalar_lea.sflag [#allocation4], %s201
          %s203 = sand.u32 %s53, 1
          %s204 = smul.addr %s203, 8
          %s205 = scalar_lea.vmem [#allocation3], %s204
          %s206 = smul.u32 2, %s29
          %208 = vsyncadd %s202, 0
          %s209 = smul.addr %s206, 2
          %s210 = sadd.s32 %s31, %s209
          %s211 = smul.addr %s210, 4
          %s212 = scalar_lea.hbm %s0, %s211
          %s213 = sshll.u32 %s212, 4
          %s214 = int_to_ptr.hbm [resolvable:$true] %s213
          %s215 = sshll.u32 %s205, 4
          %s216 = int_to_ptr.vmem [resolvable:$true] %s215
          %221 = dma.hbm_to_vmem [thread:$0]  %s214, 128, %s216, %s202, 128, 64, 4
        $region20: #{tpu_custom_call.1} parent=15 // pred_fallthru
          _
        // Predicated region
        $region21: #{tpu_custom_call.1} parent=15 // pred_check
          %p222 = pneg %p91
        $region22: #{tpu_custom_call.1} parent=15 // pred_check_branch
          %224 = sbr.rel (%p222) target = $region24
        $region23: #{tpu_custom_call.1} parent=15 // pred_region
          %s225 = sand.u32 %s22, 1
          %s226 = scalar_lea.sflag [#allocation7], %s225
          %s227 = sand.u32 %s81, 1
          %s228 = smul.addr %s227, 64
          %s229 = scalar_lea.vmem [#allocation6], %s228
          %s230 = smul.u32 16, %s31
          %232 = vsyncadd %s226, 0
          %s233 = smul.addr %s230, 2
          %s234 = sadd.s32 %s30, %s233
          %s235 = smul.addr %s234, 4
          %s236 = scalar_lea.hbm %s1, %s235
          %s237 = sshll.u32 %s236, 4
          %s238 = int_to_ptr.hbm [resolvable:$true] %s237
          %s239 = sshll.u32 %s229, 4
          %s240 = int_to_ptr.vmem [resolvable:$true] %s239
          %245 = dma.hbm_to_vmem [thread:$0]  %s238, 1024, %s240, %s226, 128, 64, 4
        $region24: #{tpu_custom_call.1} parent=15 // pred_fallthru
          _
        // Predicated region
        $region25: #{tpu_custom_call.1} parent=15 // pred_check
          %p246 = pneg %p117
        $region26: #{tpu_custom_call.1} parent=15 // pred_check_branch
          %248 = sbr.rel (%p246) target = $region28
        $region27: #{tpu_custom_call.1} parent=15 // pred_region
          %s249 = sand.u32 %s22, 1
          %s250 = scalar_lea.sflag [#allocation7], %s249
          %s251 = sand.u32 %s107, 1
          %s252 = scalar_lea.vmem [#allocation8], %s251
          %254 = vsyncadd %s250, 0
          %s255 = scalar_lea.hbm %s2, %s30
          %s257 = sshll.u32 %s255, 4
          %s258 = int_to_ptr.hbm [resolvable:$true] %s257
          %s259 = sshll.u32 %s252, 4
          %s260 = int_to_ptr.vmem [resolvable:$true] %s259
          %262 = dma.hbm_to_vmem [thread:$0]  %s258, 16, %s260, %s250
        $region28: #{tpu_custom_call.1} parent=15 // pred_fallthru
          _
        // Predicated region
        $region29: #{tpu_custom_call.1} parent=15 // pred_check
          %p263 = pneg %p145
        $region30: #{tpu_custom_call.1} parent=15 // pred_check_branch
          %265 = sbr.rel (%p263) target = $region32
        $region31: #{tpu_custom_call.1} parent=15 // pred_region
          %s266 = sand.u32 %s135, 1
          %s267 = scalar_lea.sflag [#allocation10], %s266
          %s268 = sand.u32 %s135, 1
          %s269 = smul.addr %s268, 16
          %s270 = scalar_lea.vmem [#allocation9], %s269
          %s271 = smul.u32 2, %s29
          %273 = vsyncadd %s267, 0
          %s274 = smul.addr %s271, 2
          %s275 = sadd.s32 %s30, %s274
          %s276 = smul.addr %s275, 8
          %s277 = scalar_lea.hbm %s3, %s276
          %s278 = sshll.u32 %s277, 4
          %s279 = int_to_ptr.hbm [resolvable:$true] %s278
          %s280 = sshll.u32 %s270, 4
          %s281 = int_to_ptr.vmem [resolvable:$true] %s280
          %286 = dma.hbm_to_vmem [thread:$0]  %s279, 256, %s281, %s267, 256, 128, 8
        $region32: #{tpu_custom_call.1} parent=15 // pred_fallthru
          _
      $region16: #{tpu_custom_call.1} parent=5 // pred_fallthru
        _
      %p287 = scmp.le.s32.totalorder 1, %s22
      %p288 = scmp.lt.s32.totalorder %s22, 5
      %p289 = pnand %p287, %p288
      %p290 = pneg %p289
      // Predicated region
      $region33: #{tpu_custom_call.1} parent=5 // pred_check
        _
      $region34: #{tpu_custom_call.1} parent=5 // pred_check_branch
        %292 = sbr.rel (%p289) target = $region36
      $region35: #{tpu_custom_call.1} parent=5 // pred_region
        %s293 = ssub.s32 %s22, 1
        %s294 = sand.u32 %s56, 1
        %s295 = scalar_lea.sflag [#allocation4], %s294
        %s296 = sand.u32 %s56, 1
        %s297 = smul.addr %s296, 8
        %s298 = scalar_lea.vmem [#allocation3], %s297
        // Predicated region
        $region37: #{tpu_custom_call.1} parent=35 // pred_check
          %p299 = pneg %p69
        $region38: #{tpu_custom_call.1} parent=35 // pred_check_branch
          %301 = sbr.rel (%p299) target = $region40
        $region39: #{tpu_custom_call.1} parent=35 // pred_region
          %303 = dma.done %s295, 128
        $region40: #{tpu_custom_call.1} parent=35 // pred_fallthru
          _
        %s304 = sand.u32 %s27, 1
        %s305 = scalar_lea.sflag [#allocation7], %s304
        %s306 = sand.u32 %s84, 1
        %s307 = smul.addr %s306, 64
        %s308 = scalar_lea.vmem [#allocation6], %s307
        // Predicated region
        $region41: #{tpu_custom_call.1} parent=35 // pred_check
          %p309 = pneg %p97
        $region42: #{tpu_custom_call.1} parent=35 // pred_check_branch
          %311 = sbr.rel (%p309) target = $region44
        $region43: #{tpu_custom_call.1} parent=35 // pred_region
          %313 = dma.done %s305, 1024
        $region44: #{tpu_custom_call.1} parent=35 // pred_fallthru
          _
        %s314 = sand.u32 %s27, 1
        %s315 = scalar_lea.sflag [#allocation7], %s314
        %s316 = sand.u32 %s110, 1
        %s317 = scalar_lea.vmem [#allocation8], %s316
        // Predicated region
        $region45: #{tpu_custom_call.1} parent=35 // pred_check
          %p318 = pneg %p123
        $region46: #{tpu_custom_call.1} parent=35 // pred_check_branch
          %320 = sbr.rel (%p318) target = $region48
        $region47: #{tpu_custom_call.1} parent=35 // pred_region
          %322 = dma.done %s315, 16
        $region48: #{tpu_custom_call.1} parent=35 // pred_fallthru
          _
        %s323 = sand.u32 %s138, 1
        %s324 = scalar_lea.sflag [#allocation10], %s323
        %s325 = sand.u32 %s138, 1
        %s326 = smul.addr %s325, 16
        %s327 = scalar_lea.vmem [#allocation9], %s326
        // Predicated region
        $region49: #{tpu_custom_call.1} parent=35 // pred_check
          %p328 = pneg %p151
        $region50: #{tpu_custom_call.1} parent=35 // pred_check_branch
          %330 = sbr.rel (%p328) target = $region52
        $region51: #{tpu_custom_call.1} parent=35 // pred_region
          %332 = dma.done %s324, 256
        $region52: #{tpu_custom_call.1} parent=35 // pred_fallthru
          _
        %s333 = sand.u32 %s56, 1
        %s334 = scalar_lea.sflag [#allocation4], %s333
        %s335 = sand.u32 %s56, 1
        %s336 = smul.addr %s335, 8
        %s337 = scalar_lea.vmem [#allocation3], %s336
        %p338 = pneg %p69
        %p339 = pneg %p66
        %s340 = sand.u32 %s27, 1
        %s341 = scalar_lea.sflag [#allocation7], %s340
        %s342 = sand.u32 %s84, 1
        %s343 = smul.addr %s342, 64
        %s344 = scalar_lea.vmem [#allocation6], %s343
        %p345 = pneg %p97
        %p346 = pneg %p94
        %s347 = sand.u32 %s27, 1
        %s348 = scalar_lea.sflag [#allocation7], %s347
        %s349 = sand.u32 %s110, 1
        %s350 = scalar_lea.vmem [#allocation8], %s349
        %p351 = pneg %p123
        %p352 = pneg %p120
        %s353 = sand.u32 %s138, 1
        %s354 = scalar_lea.sflag [#allocation10], %s353
        %s355 = sand.u32 %s138, 1
        %s356 = smul.addr %s355, 16
        %s357 = scalar_lea.vmem [#allocation9], %s356
        %p358 = pneg %p151
        %p359 = pneg %p148
        %p360 = pneg %p179
        %p361 = pneg %p176
        %s362 = sand.u32 %s166, 1
        %s363 = scalar_lea.sflag [#allocation5], %s362
        %s364 = sand.u32 %s166, 1
        %s365 = smul.addr %s364, 16
        %s366 = scalar_lea.vmem [#allocation11], %s365
        %s367 = smul.u32 2, %s32
        %s368 = smul.u32 16, %s34
        %s369 = smul.u32 2, %s32
        %s370 = smul.u32 2, %s32
        %p371 = scmp.eq.s32.totalorder %s34, 0
        // Predicated region
        $region53: #{tpu_custom_call.1} parent=35 // pred_check
          %p372 = pneg %p371
        $region54: #{tpu_custom_call.1} parent=35 // pred_check_branch
          %374 = sbr.rel (%p372) target = $region56
        $region55: #{tpu_custom_call.1} parent=35 // pred_region
          %375 = vst [vmem:[#allocation2] sm:$0xff] 0.0
          %376 = vst [vmem:[#allocation2 + $0x8] sm:$0xff] 0.0
        $region56: #{tpu_custom_call.1} parent=35 // pred_fallthru
          _
        %v377 = vld [vmem:[#allocation2] sm:$0xff]
        %v378 = vld [vmem:[#allocation2 + $0x8] sm:$0xff]
        %v379 = vld [vmem:[%s298] sm:$0xf]
        %v380 = vld [vmem:[%s298 + $0x4] sm:$0xf]
        %v381 = vld [vmem:[%s308] sm:$0xf]
        %v382 = vld [vmem:[%s308 + $0x4] sm:$0xf]
        %v383 = vld [vmem:[%s308 + $0x8] sm:$0xf]
        %v384 = vld [vmem:[%s308 + $0xc] sm:$0xf]
        %v385 = vld [vmem:[%s308 + $0x10] sm:$0xf]
        %v386 = vld [vmem:[%s308 + $0x14] sm:$0xf]
        %v387 = vld [vmem:[%s308 + $0x18] sm:$0xf]
        %v388 = vld [vmem:[%s308 + $0x1c] sm:$0xf]
        %v389 = vld [vmem:[%s308 + $0x20] sm:$0xf]
        %v390 = vld [vmem:[%s308 + $0x24] sm:$0xf]
        %v391 = vld [vmem:[%s308 + $0x28] sm:$0xf]
        %v392 = vld [vmem:[%s308 + $0x2c] sm:$0xf]
        %v393 = vld [vmem:[%s308 + $0x30] sm:$0xf]
        %v394 = vld [vmem:[%s308 + $0x34] sm:$0xf]
        %v395 = vld [vmem:[%s308 + $0x38] sm:$0xf]
        %v396 = vld [vmem:[%s308 + $0x3c] sm:$0xf]
        %v399 = vunpack.c.l.b16 %v379
        %v400 = vunpack.c.l.b16 %v380
        %v401 = vpack.c.b16 %v400, %v399
        %v419 = vunpack.c.l.b16 %v381
        %v420 = vunpack.c.l.b16 %v382
        %v421 = vunpack.c.l.b16 %v383
        %v422 = vunpack.c.l.b16 %v384
        %v423 = vunpack.c.l.b16 %v385
        %v424 = vunpack.c.l.b16 %v386
        %v425 = vunpack.c.l.b16 %v387
        %v426 = vunpack.c.l.b16 %v388
        %v427 = vunpack.c.l.b16 %v389
        %v428 = vunpack.c.l.b16 %v390
        %v429 = vunpack.c.l.b16 %v391
        %v430 = vunpack.c.l.b16 %v392
        %v431 = vunpack.c.l.b16 %v393
        %v432 = vunpack.c.l.b16 %v394
        %v433 = vunpack.c.l.b16 %v395
        %v434 = vunpack.c.l.b16 %v396
        %v435 = vpack.c.b16 %v420, %v419
        %v436 = vpack.c.b16 %v422, %v421
        %v437 = vpack.c.b16 %v424, %v423
        %v438 = vpack.c.b16 %v426, %v425
        %v439 = vpack.c.b16 %v428, %v427
        %v440 = vpack.c.b16 %v430, %v429
        %v441 = vpack.c.b16 %v432, %v431
        %v442 = vpack.c.b16 %v434, %v433
        %451 = vmatpush.bf16.msra.mxu0 %v442
        %452 = vmatpush.bf16.msra.mxu0 %v441
        %453 = vmatpush.bf16.msra.mxu0 %v440
        %454 = vmatpush.bf16.msra.mxu0 %v439
        %455 = vmatpush.bf16.msra.mxu0 %v438
        %456 = vmatpush.bf16.msra.mxu0 %v437
        %457 = vmatpush.bf16.msra.mxu0 %v436
        %458 = vmatpush.bf16.msra.mxu0 %v435
        %459 = vmatmul.bf16.gmra.mxu0 %v401
        %v460 = vpop.f32.mrf.mxu0
        %v461 = vadd.f32 0.0, %v460
        %v462 = vpop.f32.mrf.mxu0
        %v463 = vadd.f32 0.0, %v462
        %464 = vdwg.mxu0
        %v465 = vadd.f32 %v377, %v461
        %v466 = vadd.f32 %v378, %v463
        %467 = vst [vmem:[#allocation2] sm:$0xff] %v465
        %468 = vst [vmem:[#allocation2 + $0x8] sm:$0xff] %v466
        %p469 = scmp.eq.s32.totalorder %s34, 1
        // Predicated region
        $region57: #{tpu_custom_call.1} parent=35 // pred_check
          %p470 = pneg %p469
        $region58: #{tpu_custom_call.1} parent=35 // pred_check_branch
          %472 = sbr.rel (%p470) target = $region60
        $region59: #{tpu_custom_call.1} parent=35 // pred_region
          %v473 = vld [vmem:[#allocation2] sm:$0xff]
          %v474 = vld [vmem:[#allocation2 + $0x8] sm:$0xff]
          %v475 = vld [vmem:[%s317] sm:$0x1]
          %v477 = vperm.slane %v475, 0
          %v479 = vadd.f32 %v473, %v477
          %v480 = vadd.f32 %v474, %v477
          %v481 = vld [vmem:[%s327] sm:$0xff]
          %v482 = vld [vmem:[%s327 + $0x8] sm:$0xff]
          %v483 = vadd.s32 %v481, 2147483648
          %vm485 = vcmp.ge.s32.totalorder %v483, 2576980378
          %v486 = vadd.s32 %v482, 2147483648
          %vm488 = vcmp.ge.s32.totalorder %v486, 2576980378
          %vm489 = vcmp.gt.f32.partialorder %v479, 0.0
          %vm490 = vcmp.gt.f32.partialorder %v480, 0.0
          %vm491 = vmand %vm485, %vm489
          %vm492 = vmand %vm488, %vm490
          %v493 = vmul.f32 %v479, 1.1111112
          %v494 = vmul.f32 %v480, 1.1111112
          %v495 = vsel %vm491, %v493, 0.0
          %v496 = vsel %vm492, %v494, 0.0
          %497 = vst [vmem:[%s366] sm:$0xff] %v495
          %498 = vst [vmem:[%s366 + $0x8] sm:$0xff] %v496
        $region60: #{tpu_custom_call.1} parent=35 // pred_fallthru
          _
        %s499 = sand.u32 %s166, 1
        %s500 = scalar_lea.sflag [#allocation5], %s499
        %s501 = sand.u32 %s166, 1
        %s502 = smul.addr %s501, 16
        %s503 = scalar_lea.vmem [#allocation11], %s502
        // Predicated region
        $region61: #{tpu_custom_call.1} parent=35 // pred_check
          %p504 = pneg %p176
        $region62: #{tpu_custom_call.1} parent=35 // pred_check_branch
          %506 = sbr.rel (%p504) target = $region64
        $region63: #{tpu_custom_call.1} parent=35 // pred_region
          %s507 = smul.u32 2, %s32
          %509 = vsyncadd %s500, 0
          %s510 = smul.addr %s507, 2
          %s511 = sadd.s32 %s33, %s510
          %s512 = smul.addr %s511, 8
          %s513 = scalar_lea.hbm %s4, %s512
          %s514 = sshll.u32 %s503, 4
          %s515 = int_to_ptr.vmem [resolvable:$true] %s514
          %s516 = sshll.u32 %s513, 4
          %s517 = int_to_ptr.hbm [resolvable:$true] %s516
          %522 = dma.vmem_to_hbm [thread:$0]  %s515, 256, %s517, %s500, 128, 256, 8
        $region64: #{tpu_custom_call.1} parent=35 // pred_fallthru
          _
      $region36: #{tpu_custom_call.1} parent=5 // pred_fallthru
        _
      %p523 = scmp.le.s32.totalorder 2, %s22
      // Predicated region
      $region65: #{tpu_custom_call.1} parent=5 // pred_check
        %p524 = pneg %p523
      $region66: #{tpu_custom_call.1} parent=5 // pred_check_branch
        %526 = sbr.rel (%p524) target = $region68
      $region67: #{tpu_custom_call.1} parent=5 // pred_region
        %s527 = ssub.s32 %s22, 2
        // Predicated region
        $region69: #{tpu_custom_call.1} parent=67 // pred_check
          %p528 = pneg %p182
        $region70: #{tpu_custom_call.1} parent=67 // pred_check_branch
          %530 = sbr.rel (%p528) target = $region72
        $region71: #{tpu_custom_call.1} parent=67 // pred_region
          %s531 = sand.u32 %s167, 1
          %s532 = scalar_lea.sflag [#allocation5], %s531
          %s533 = sand.u32 %s167, 1
          %s534 = smul.addr %s533, 16
          %s535 = scalar_lea.vmem [#allocation11], %s534
          %537 = dma.done %s532, 256
        $region72: #{tpu_custom_call.1} parent=67 // pred_fallthru
          _
      $region68: #{tpu_custom_call.1} parent=5 // pred_fallthru
        _
    $region6: #{tpu_custom_call.1} parent=1 // loop_footer
      %s26 = sadd.s32 1, %s22
    $region7: #{tpu_custom_call.1} parent=1 // loop_footer_branch
      %21 = sbr.rel target = $region3
    $region8: #{tpu_custom_call.1} parent=1 // loop_exit
      _
    %538 = vsyncpa [#allocation4], 1
    %s539 = scalar_lea.sflag [#allocation4], 1
    %540 = vsyncpa %s539, 1
    %541 = vsyncpa [#allocation7], 1
    %s542 = scalar_lea.sflag [#allocation7], 1
    %543 = vsyncpa %s542, 1
    %544 = vsyncpa [#allocation10], 1
    %s545 = scalar_lea.sflag [#allocation10], 1
    %546 = vsyncpa %s545, 1
    %547 = vsyncpa [#allocation5], 1
    %s548 = scalar_lea.sflag [#allocation5], 1
    %549 = vsyncpa %s548, 1

</llo_original>
